<compile_context>
chip_gen: v5e
topology: v5e:2x2
jax: 0.10.0
libtpu: 0.0.40
codegen_flags: <defaults>
</compile_context>

<pallas_src>
import functools

import jax
import jax.numpy as jnp
from jax.experimental import pallas as pl
from jax.experimental.pallas import tpu as pltpu


def _attention_head_kernel(x_ref, wt_ref, bw_ref, vrow_ref, o_ref, *, seq_len):
    # x_ref:    (TB, S_pad, H)  TB batch elements per grid step
    # wt_ref:   (H, H)          W.weight transposed -> (in, out)
    # bw_ref:   (1, H)          W.bias
    # vrow_ref: (1, H)          V.weight as a row vector (V.bias dropped: no-op)
    # o_ref:    (TB, H)         pooled context vectors
    TB, S, H = x_ref.shape

    # att = tanh(x @ W^T + b_W): one large (TB*S, H) @ (H, H) MXU matmul per
    # grid step.  S is padded to a multiple of 8, so this reshape is a free
    # layout collapse (no tile-crossing VMEM copy).
    x2 = x_ref[...].reshape(TB * S, H)
    att = jnp.tanh(
        jnp.dot(x2, wt_ref[...], preferred_element_type=jnp.float32) + bw_ref[...]
    )                                                             # (TB*S, H)

    # V projection has N=1: VPU multiply + XLU lane reduction instead of an MXU
    # matmul that would waste all but one output column.
    score = jnp.sum(att * vrow_ref[...], axis=-1, keepdims=True)  # (TB*S, 1)
    score = score.reshape(TB, S, 1)

    if seq_len != S:  # mask padded sequence positions out of the softmax
        pos = jax.lax.broadcasted_iota(jnp.int32, (TB, S, 1), 1)
        score = jnp.where(pos < seq_len, score, -jnp.inf)

    # softmax over the sequence axis, per batch element (f32 throughout)
    m = jnp.max(score, axis=1, keepdims=True)                     # (TB, 1, 1)
    e = jnp.exp(score - m)                                        # (TB, S, 1)
    w = e * pl.reciprocal(jnp.sum(e, axis=1, keepdims=True), approx=False)

    # context[b, :] = sum_s w[b, s] * x[b, s, :]
    # Re-read the features from VMEM here instead of keeping the earlier load
    # live across the matmul/tanh/score chain (reduces vreg pressure / spills).
    ctx = jnp.sum(w * x_ref[...], axis=1)                         # (TB, H)
    o_ref[...] = ctx.astype(o_ref.dtype)


def _vmem_capacity_bytes(default=64 << 20):
    """Physical per-core VMEM; conservative (v7x-sized) fallback if unknown."""
    try:
        cap = getattr(pltpu.get_tpu_info(), "vmem_capacity_bytes", None)
        if cap:
            return int(cap)
    except Exception:
        pass
    return default


def _pick_batch_tile(B, S_pad, H, itemsize, *, target_rows, x_budget_bytes):
    """Pick the batch tile TB: fill the MXU M dimension (TB*S_pad rows) up to
    target_rows, keep the double-buffered x stream inside x_budget_bytes, and
    (when B is large enough) keep >= 2 sublane-aligned grid steps so the
    parallel axis can shard across v7x's two TensorCores."""
    rows_cap = max(1, target_rows // S_pad)
    vmem_cap = max(1, x_budget_bytes // (2 * S_pad * H * itemsize))
    tb = max(1, min(B, rows_cap, vmem_cap))
    if B >= 16 and tb >= 8:
        tb = min(tb, (B + 1) // 2)        # >= 2 grid steps (megacore)
        tb = max(8, (tb // 8) * 8)        # sublane-aligned output tiles
    return tb


def _const_spec(shape):
    """BlockSpec for a grid-resident operand (constant index_map), single
    buffered: double-buffering an operand that is DMA'd once is pure VMEM
    waste."""
    index_map = lambda b: (0,) * len(shape)
    if hasattr(pl, "Buffered"):
        try:
            return pl.BlockSpec(shape, index_map, pipeline_mode=pl.Buffered(1))
        except TypeError:
            pass
    return pl.BlockSpec(shape, index_map)


def attention_head_forward(features, w_weight, w_bias, v_weight, v_bias):
    """features: (B, S, H) float32. Weights follow PyTorch nn.Linear layout:
    w_weight (H, H), w_bias (H,), v_weight (1, H), v_bias (1,)."""
    B, S, H = features.shape
    del v_bias  # softmax over the sequence axis is invariant to a constant bias
    itemsize = features.dtype.itemsize

    wt = w_weight.T                  # (H_in, H_out)
    bw = w_bias.reshape(1, H)        # (1, H)
    vrow = v_weight.reshape(1, H)    # (1, H)

    # Generation-aware VMEM budgeting (v7x: 64 MiB physical; v5e/v6e: 128 MiB).
    vmem_cap = _vmem_capacity_bytes()
    x_budget = min(32 << 20, int(0.4 * vmem_cap))

    # Pad S to a sublane multiple so the in-kernel reshape is free.
    S_pad = -(-S // 8) * 8
    TB = _pick_batch_tile(B, S_pad, H, itemsize,
                          target_rows=1024, x_budget_bytes=x_budget)
    B_pad = -(-B // TB) * TB
    grid = (B_pad // TB,)

    if (B_pad, S_pad) != (B, S):
        features = jnp.pad(features, ((0, B_pad - B), (0, S_pad - S), (0, 0)))

    # Explicit scoped-VMEM limit: double-buffered x + out streams plus the
    # single-buffered resident weights, with headroom, capped below physical.
    needed = (2 * TB * S_pad * H + 2 * TB * H + H * H + 2 * H) * itemsize
    vmem_limit = min(max(needed + (8 << 20), 32 << 20), int(0.85 * vmem_cap))
    vmem_limit = max(vmem_limit, needed + (2 << 20))

    kernel = functools.partial(_attention_head_kernel, seq_len=S)

    out = pl.pallas_call(
        kernel,
        out_shape=jax.ShapeDtypeStruct((B_pad, H), features.dtype),
        grid_spec=pltpu.PrefetchScalarGridSpec(
            num_scalar_prefetch=0,
            grid=grid,
            in_specs=[
                pl.BlockSpec((TB, S_pad, H), lambda b: (b, 0, 0)),
                _const_spec((H, H)),
                _const_spec((1, H)),
                _const_spec((1, H)),
            ],
            out_specs=pl.BlockSpec((TB, H), lambda b: (b, 0)),
        ),
        compiler_params=pltpu.CompilerParams(
            dimension_semantics=("parallel",),
            vmem_limit_bytes=int(vmem_limit),
        ),
    )(features, wt, bw, vrow)

    return out[:B] if B_pad != B else out


def attention_head_ref(features, w_weight, w_bias, v_weight, v_bias):
    """Pure-JAX reference mirroring the PyTorch forward."""
    att = jnp.tanh(jnp.einsum("bsh,oh->bso", features, w_weight) + w_bias)
    score = jnp.einsum("bsh,oh->bso", att, v_weight) + v_bias      # (B, S, 1)
    weights = jax.nn.softmax(score, axis=1)
    return jnp.sum(weights * features, axis=1)                     # (B, H)


if __name__ == "__main__":
    B, S, H = 2, 8, 32
    key = jax.random.PRNGKey(0)
    k_x, k_w, k_bw, k_v, k_bv = jax.random.split(key, 5)

    features = jax.random.normal(k_x, (B, S, H), dtype=jnp.float32)
    # Deterministic "Linear" parameters (synthetic, not a checkpoint load).
    w_weight = jax.random.normal(k_w, (H, H), dtype=jnp.float32) * 0.1
    w_bias = jax.random.normal(k_bw, (H,), dtype=jnp.float32) * 0.1
    v_weight = jax.random.normal(k_v, (1, H), dtype=jnp.float32) * 0.1
    v_bias = jax.random.normal(k_bv, (1,), dtype=jnp.float32) * 0.1

    out = attention_head_forward(features, w_weight, w_bias, v_weight, v_bias)
    out = jax.block_until_ready(out)

    ref = attention_head_ref(features, w_weight, w_bias, v_weight, v_bias)
    assert out.shape == (B, H)
    assert jnp.allclose(out, ref, atol=1e-5, rtol=1e-5), (
        f"max abs err = {jnp.max(jnp.abs(out - ref))}"
    )
    print("KERNEL_OK")
</pallas_src>

<mosaic_0001>
module attributes {stable_mosaic.version = 11 : i64} {
  func.func @_attention_head_kernel(%arg0: i32, %arg1: memref<2x8x32xf32, #tpu.memory_space<vmem>>, %arg2: memref<32x32xf32, #tpu.memory_space<vmem>>, %arg3: memref<1x32xf32, #tpu.memory_space<vmem>>, %arg4: memref<1x32xf32, #tpu.memory_space<vmem>>, %arg5: memref<2x32xf32, #tpu.memory_space<vmem>>) attributes {dimension_semantics = [#tpu.dimension_semantics<parallel>], iteration_bounds = array<i64: 1>, scalar_prefetch = 0 : i64, scratch_operands = 0 : i64, tpu.core_type = #tpu.core_type<tc>, window_params = [{transform_indices = @transform_0, window_bounds = array<i64: 2, 8, 32>}, {pipeline_mode = #tpu.pipeline_mode<synchronous>, transform_indices = @transform_1, window_bounds = array<i64: 32, 32>}, {pipeline_mode = #tpu.pipeline_mode<synchronous>, transform_indices = @transform_2, window_bounds = array<i64: 1, 32>}, {pipeline_mode = #tpu.pipeline_mode<synchronous>, transform_indices = @transform_3, window_bounds = array<i64: 1, 32>}, {transform_indices = @transform_4, window_bounds = array<i64: 2, 32>}]} {
    %c0 = arith.constant 0 : index
    %c0_0 = arith.constant 0 : index
    %c0_1 = arith.constant 0 : index
    %0 = vector.load %arg1[%c0, %c0_0, %c0_1] : memref<2x8x32xf32, #tpu.memory_space<vmem>>, vector<2x8x32xf32>
    %1 = vector.shape_cast %0 : vector<2x8x32xf32> to vector<16x32xf32>
    %c0_2 = arith.constant 0 : index
    %c0_3 = arith.constant 0 : index
    %2 = vector.load %arg2[%c0_2, %c0_3] : memref<32x32xf32, #tpu.memory_space<vmem>>, vector<32x32xf32>
    %cst = arith.constant dense<0.000000e+00> : vector<16x32xf32>
    %3 = tpu.matmul %1, %2, %cst {dimension_numbers = #tpu.dot_dimension_numbers<[1], [0], [0], [1], [0, 0, 1, 1], [], []>} : vector<16x32xf32>, vector<32x32xf32>, vector<16x32xf32> -> vector<16x32xf32>
    %c0_4 = arith.constant 0 : index
    %c0_5 = arith.constant 0 : index
    %4 = vector.load %arg3[%c0_4, %c0_5] : memref<1x32xf32, #tpu.memory_space<vmem>>, vector<1x32xf32>
    %5 = vector.broadcast %4 : vector<1x32xf32> to vector<16x32xf32>
    %6 = arith.addf %3, %5 : vector<16x32xf32>
    %7 = math.tanh %6 : vector<16x32xf32>
    %c0_6 = arith.constant 0 : index
    %c0_7 = arith.constant 0 : index
    %8 = vector.load %arg4[%c0_6, %c0_7] : memref<1x32xf32, #tpu.memory_space<vmem>>, vector<1x32xf32>
    %9 = vector.broadcast %8 : vector<1x32xf32> to vector<16x32xf32>
    %10 = arith.mulf %7, %9 : vector<16x32xf32>
    %cst_8 = arith.constant dense<0.000000e+00> : vector<16xf32>
    %11 = vector.multi_reduction <add>, %10, %cst_8 [1] : vector<16x32xf32> to vector<16xf32>
    %12 = vector.shape_cast %11 : vector<16xf32> to vector<16x1xf32>
    %13 = vector.shape_cast %12 : vector<16x1xf32> to vector<2x8x1xf32>
    %cst_9 = arith.constant dense<0xFF800000> : vector<2x1xf32>
    %14 = vector.multi_reduction <maximumf>, %13, %cst_9 [1] : vector<2x8x1xf32> to vector<2x1xf32>
    %15 = vector.shape_cast %14 : vector<2x1xf32> to vector<2x1x1xf32>
    %16 = vector.broadcast %15 : vector<2x1x1xf32> to vector<2x8x1xf32>
    %17 = arith.subf %13, %16 : vector<2x8x1xf32>
    %18 = math.exp %17 : vector<2x8x1xf32>
    %cst_10 = arith.constant dense<0.000000e+00> : vector<2x1xf32>
    %19 = vector.multi_reduction <add>, %18, %cst_10 [1] : vector<2x8x1xf32> to vector<2x1xf32>
    %20 = vector.shape_cast %19 : vector<2x1xf32> to vector<2x1x1xf32>
    %21 = tpu.reciprocal %20 : vector<2x1x1xf32> -> vector<2x1x1xf32>
    %22 = vector.broadcast %21 : vector<2x1x1xf32> to vector<2x8x1xf32>
    %23 = arith.mulf %18, %22 : vector<2x8x1xf32>
    %c0_11 = arith.constant 0 : index
    %c0_12 = arith.constant 0 : index
    %c0_13 = arith.constant 0 : index
    %24 = vector.load %arg1[%c0_11, %c0_12, %c0_13] : memref<2x8x32xf32, #tpu.memory_space<vmem>>, vector<2x8x32xf32>
    %25 = vector.broadcast %23 : vector<2x8x1xf32> to vector<2x8x32xf32>
    %26 = arith.mulf %25, %24 : vector<2x8x32xf32>
    %cst_14 = arith.constant dense<0.000000e+00> : vector<2x32xf32>
    %27 = vector.multi_reduction <add>, %26, %cst_14 [1] : vector<2x8x32xf32> to vector<2x32xf32>
    %c0_15 = arith.constant 0 : index
    %c0_16 = arith.constant 0 : index
    %28 = vector.load %arg5[%c0_15, %c0_16] : memref<2x32xf32, #tpu.memory_space<vmem>>, vector<2x32xf32>
    tpu.vector_store %arg5[%c0_15, %c0_16], %27 {strides = array<i32>} : memref<2x32xf32, #tpu.memory_space<vmem>>, vector<2x32xf32>,
    return
  }
  func.func @transform_0(%arg0: i32) -> (i32, i32, i32) {
    %c0_i32 = arith.constant 0 : i32
    %c0_i32_0 = arith.constant 0 : i32
    %c0_i32_1 = arith.constant 0 : i32
    return %arg0, %c0_i32, %c0_i32_0 : i32, i32, i32
  }
  func.func @transform_1(%arg0: i32) -> (i32, i32) {
    %c0_i32 = arith.constant 0 : i32
    %c0_i32_0 = arith.constant 0 : i32
    %c0_i32_1 = arith.constant 0 : i32
    return %c0_i32, %c0_i32_0 : i32, i32
  }
  func.func @transform_2(%arg0: i32) -> (i32, i32) {
    %c0_i32 = arith.constant 0 : i32
    %c0_i32_0 = arith.constant 0 : i32
    %c0_i32_1 = arith.constant 0 : i32
    return %c0_i32, %c0_i32_0 : i32, i32
  }
  func.func @transform_3(%arg0: i32) -> (i32, i32) {
    %c0_i32 = arith.constant 0 : i32
    %c0_i32_0 = arith.constant 0 : i32
    %c0_i32_1 = arith.constant 0 : i32
    return %c0_i32, %c0_i32_0 : i32, i32
  }
  func.func @transform_4(%arg0: i32) -> (i32, i32) {
    %c0_i32 = arith.constant 0 : i32
    %c0_i32_0 = arith.constant 0 : i32
    return %arg0, %c0_i32 : i32, i32
  }
}

</mosaic_0001>

<llo_original>
// kernel: tpu_custom_call.1
$region0: #{tpu_custom_call.1}
  #allocation0 [shape = 'u32[]', space=smem, size = 0x4, offset = 0x4, fixed_abs, tag = 'smem constant byte address 0x4 - core index']
  #allocation1 [shape = 'u32[72,128]{1,0:T(1,128)}', space=vmem, size = 0x9000, scoped, tag = 'internal scratch']
  %s0 = inlined_call_operand.hbm [shape: f32[2,8,32], index: 0, kind: input, shape index: {}]
  %s1 = inlined_call_operand.hbm [shape: f32[32,32], index: 1, kind: input, shape index: {}]
  %s2 = inlined_call_operand.vmem [shape: f32[1,32], index: 2, kind: input, shape index: {}]
  %s3 = inlined_call_operand.vmem [shape: f32[1,32], index: 3, kind: input, shape index: {}]
  %s4 = inlined_call_operand.hbm [shape: f32[2,32], index: 4, kind: output, shape index: {}]
  %s5 = sld [smem:[#allocation0]]
  $region34: #{tpu_custom_call.1} parent=0
    _
  %s7 = ssub.s32 1, %s5
  %s8 = scalar_select 0, %s7, %s5
  $region1: #{tpu_custom_call.1} parent=0
    #allocation2 [shape = 'u8[8192]{0}', space=vmem, size = 0x2000, scoped, tag = 'input window, operand 0, single buffered']
    #allocation3 [shape = 's32[1]{0}', space=sflag, size = 0x4, scoped, tag = 'scoped memory for tpu_custom_call.1']
    #allocation4 [shape = 's32[1]{0}', space=sflag, size = 0x4, scoped, tag = 'scoped memory for tpu_custom_call.1']
    #allocation5 [shape = 'u8[16384]{0}', space=vmem, size = 0x4000, scoped, tag = 'input window, operand 1, single buffered']
    #allocation6 [shape = 's32[1]{0}', space=sflag, size = 0x4, scoped, tag = 'scoped memory for tpu_custom_call.1']
    #allocation7 [shape = 'u8[1024]{0}', space=vmem, size = 0x400, scoped, tag = 'output window, operand 0, single buffered']
    %9 = vsyncpa [#allocation3], 0
    %10 = vsyncpa [#allocation6], 0
    %11 = vsyncpa [#allocation4], 0
    // Predicated region
    $region2: #{tpu_custom_call.1} parent=1 // pred_check
      _
    $region3: #{tpu_custom_call.1} parent=1 // pred_check_branch
      %13 = sbr.rel (0) target = $region5
    $region4: #{tpu_custom_call.1} parent=1 // pred_region
      %15 = vsyncadd [#allocation3], 0
      %s16 = sshll.u32 %s0, 4
      %s17 = int_to_ptr.hbm [resolvable:$true] %s16
      %s18 = sshll.u32 [#allocation2], 4
      %s19 = int_to_ptr.vmem [resolvable:$true] %s18
      %24 = dma.hbm_to_vmem [thread:$0]  %s17, 256, %s19, [#allocation3], 128, 128, 8
    $region5: #{tpu_custom_call.1} parent=1 // pred_fallthru
      _
    // Predicated region
    $region6: #{tpu_custom_call.1} parent=1 // pred_check
      _
    $region7: #{tpu_custom_call.1} parent=1 // pred_check_branch
      %26 = sbr.rel (0) target = $region9
    $region8: #{tpu_custom_call.1} parent=1 // pred_region
      %28 = vsyncadd [#allocation6], 0
      %s29 = sshll.u32 %s1, 4
      %s30 = int_to_ptr.hbm [resolvable:$true] %s29
      %s31 = sshll.u32 [#allocation5], 4
      %s32 = int_to_ptr.vmem [resolvable:$true] %s31
      %37 = dma.hbm_to_vmem [thread:$0]  %s30, 512, %s32, [#allocation6], 128, 128, 8
    $region9: #{tpu_custom_call.1} parent=1 // pred_fallthru
      _
    // Predicated region
    $region10: #{tpu_custom_call.1} parent=1 // pred_check
      _
    $region11: #{tpu_custom_call.1} parent=1 // pred_check_branch
      %39 = sbr.rel (0) target = $region13
    $region12: #{tpu_custom_call.1} parent=1 // pred_region
      _
    $region13: #{tpu_custom_call.1} parent=1 // pred_fallthru
      _
    // Predicated region
    $region14: #{tpu_custom_call.1} parent=1 // pred_check
      _
    $region15: #{tpu_custom_call.1} parent=1 // pred_check_branch
      %41 = sbr.rel (0) target = $region17
    $region16: #{tpu_custom_call.1} parent=1 // pred_region
      _
    $region17: #{tpu_custom_call.1} parent=1 // pred_fallthru
      _
    // Predicated region
    $region18: #{tpu_custom_call.1} parent=1 // pred_check
      _
    $region19: #{tpu_custom_call.1} parent=1 // pred_check_branch
      %43 = sbr.rel (0) target = $region21
    $region20: #{tpu_custom_call.1} parent=1 // pred_region
      %45 = dma.done [#allocation3], 256
    $region21: #{tpu_custom_call.1} parent=1 // pred_fallthru
      _
    // Predicated region
    $region22: #{tpu_custom_call.1} parent=1 // pred_check
      _
    $region23: #{tpu_custom_call.1} parent=1 // pred_check_branch
      %47 = sbr.rel (0) target = $region25
    $region24: #{tpu_custom_call.1} parent=1 // pred_region
      %49 = dma.done [#allocation6], 512
    $region25: #{tpu_custom_call.1} parent=1 // pred_fallthru
      _
    %v50 = vld [vmem:[#allocation2] sm:$0xff]
    %v51 = vld [vmem:[#allocation2 + $0x8] sm:$0xff]
    %v52 = vld [vmem:[#allocation5] sm:$0xff]
    %v53 = vld [vmem:[#allocation5 + $0x8] sm:$0xff]
    %v54 = vld [vmem:[#allocation5 + $0x10] sm:$0xff]
    %v55 = vld [vmem:[#allocation5 + $0x18] sm:$0xff]
    %v56 = vld [vmem:[%s2] sm:$0x1]
    %v58 = vperm.slane %v56, 0
    %vm60 = vcmask 261120
    %v62 = vsel %vm60, %v50, 0
    %v65 = vsel %vm60, %v51, 0
    %67 = vmatpush.msra.mxu0 0.0
    %68 = vmatpush.msra.mxu0 0.0
    %69 = vmatpush.msra.mxu0 0.0
    %70 = vmatpush.msra.mxu0 0.0
    %71 = vmatpush.msra.mxu0 0.0
    %72 = vmatpush.msra.mxu0 0.0
    %73 = vmatpush.msra.mxu0 0.0
    %74 = vmatpush.msra.mxu0 0.0
    %75 = vmatpush.msra.mxu0 0.0
    %76 = vmatpush.msra.mxu0 0.0
    %77 = vmatpush.msra.mxu0 0.0
    %78 = vmatpush.msra.mxu0 0.0
    %79 = vmatpush.msra.mxu0 %v55
    %80 = vmatpush.msra.mxu0 %v54
    %81 = vmatpush.msra.mxu0 %v53
    %82 = vmatpush.msra.mxu0 %v52
    %83 = vmatmul.f32.gmra.mxu0 %v62
    %v84 = vpop.f32.mrf.mxu0
    %v85 = vadd.f32 %v58, %v84
    %86 = vmatmul.f32.gmra.mxu0 %v65
    %v87 = vpop.f32.mrf.mxu0
    %v88 = vadd.f32 %v58, %v87
    %89 = vdwg.mxu0
    %v90 = vtanh.pop %v85
    %v91 = vtanh.pop %v88
    %v92 = vld [vmem:[%s3] sm:$0x1]
    %v94 = vperm.slane %v92, 0
    %v96 = vmul.f32 %v90, %v94
    %v97 = vmul.f32 %v91, %v94
    %v98 = vsel %vm60, %v96, 0.0
    %99 = vadd.xlane.f32.xlu0 %v98
    %v100 = vpop.xlane.xlu0 %99
    %v101 = vsel %vm60, %v97, 0.0
    %102 = vadd.xlane.f32.xlu0 %v101
    %v103 = vpop.xlane.xlu0 %102
    %v104 = vrot.slane %v100, 4
    %v105 = vmax.f32 %v100, %v104
    %v106 = vrot.slane %v105, 2
    %v107 = vmax.f32 %v105, %v106
    %v108 = vrot.slane %v107, 1
    %v109 = vmax.f32 %v107, %v108
    %v110 = vrot.slane %v103, 4
    %v111 = vmax.f32 %v103, %v110
    %v112 = vrot.slane %v111, 2
    %v113 = vmax.f32 %v111, %v112
    %v114 = vrot.slane %v113, 1
    %v115 = vmax.f32 %v113, %v114
    %v116 = vsub.f32 %v100, %v109
    %v117 = vsub.f32 %v103, %v115
    %v118 = vmul.f32 %v116, 1.442695
    %v119 = vpow.pop %v118
    %v120 = vmul.f32 %v117, 1.442695
    %v121 = vpow.pop %v120
    %v122 = vrot.slane %v119, 4
    %v123 = vadd.f32 %v119, %v122
    %v124 = vrot.slane %v123, 2
    %v125 = vadd.f32 %v123, %v124
    %v126 = vrot.slane %v125, 1
    %v127 = vadd.f32 %v125, %v126
    %v128 = vrot.slane %v121, 4
    %v129 = vadd.f32 %v121, %v128
    %v130 = vrot.slane %v129, 2
    %v131 = vadd.f32 %v129, %v130
    %v132 = vrot.slane %v131, 1
    %v133 = vadd.f32 %v131, %v132
    %v134 = vrcp.pop %v127
    %v135 = vmul.f32 %v127, %v134
    %v136 = vsub.f32 1.0, %v135
    %v137 = vmul.f32 %v134, %v136
    %v138 = vadd.f32 %v134, %v137
    %vm139 = vweird.f32 %v127
    %vm140 = vweird.f32 %v134
    %vm141 = vmor %vm139, %vm140
    %v142 = vsel %vm141, %v134, %v138
    %v143 = vand.u32 2147483647, %v127
    %vm144 = vcmp.eq.f32.partialorder %v143, 8.507059e+37
    %v145 = vand.u32 %v127, 2147483648
    %v146 = vor.u32 1.1754944e-38, %v145
    %v147 = vsel %vm144, %v146, %v142
    %v148 = vrcp.pop %v133
    %v149 = vmul.f32 %v133, %v148
    %v150 = vsub.f32 1.0, %v149
    %v151 = vmul.f32 %v148, %v150
    %v152 = vadd.f32 %v148, %v151
    %vm153 = vweird.f32 %v133
    %vm154 = vweird.f32 %v148
    %vm155 = vmor %vm153, %vm154
    %v156 = vsel %vm155, %v148, %v152
    %v157 = vand.u32 2147483647, %v133
    %vm158 = vcmp.eq.f32.partialorder %v157, 8.507059e+37
    %v159 = vand.u32 %v133, 2147483648
    %v160 = vor.u32 1.1754944e-38, %v159
    %v161 = vsel %vm158, %v160, %v156
    %v162 = vmul.f32 %v119, %v147
    %v163 = vmul.f32 %v121, %v161
    %v164 = vmul.f32 %v162, %v50
    %v165 = vmul.f32 %v163, %v51
    %v166 = vsel %vm60, %v164, 0.0
    %v167 = vrot.slane %v166, 4
    %v168 = vadd.f32 %v166, %v167
    %v169 = vrot.slane %v168, 2
    %v170 = vadd.f32 %v168, %v169
    %v171 = vrot.slane %v170, 1
    %v172 = vadd.f32 %v170, %v171
    %v173 = vsel %vm60, %v165, 0.0
    %v174 = vrot.slane %v173, 4
    %v175 = vadd.f32 %v173, %v174
    %v176 = vrot.slane %v175, 2
    %v177 = vadd.f32 %v175, %v176
    %v178 = vrot.slane %v177, 1
    %v179 = vadd.f32 %v177, %v178
    %vm182 = vcmask 1041409
    %v183 = vsel %vm182, %v179, %v172
    %vm185 = vcmask 254976
    %186 = vst.msk [vmem:[#allocation7] sm:$0x3] %vm185, %v183
    // Predicated region
    $region26: #{tpu_custom_call.1} parent=1 // pred_check
      _
    $region27: #{tpu_custom_call.1} parent=1 // pred_check_branch
      %188 = sbr.rel (0) target = $region29
    $region28: #{tpu_custom_call.1} parent=1 // pred_region
      %190 = vsyncadd [#allocation4], 0
      %s192 = sshll.u32 [#allocation7], 4
      %s193 = int_to_ptr.vmem [resolvable:$true] %s192
      %s194 = sshll.u32 %s4, 4
      %s195 = int_to_ptr.hbm [resolvable:$true] %s194
      %197 = dma.vmem_to_hbm [thread:$0]  %s193, 32, %s195, [#allocation4]
    $region29: #{tpu_custom_call.1} parent=1 // pred_fallthru
      _
    // Predicated region
    $region30: #{tpu_custom_call.1} parent=1 // pred_check
      _
    $region31: #{tpu_custom_call.1} parent=1 // pred_check_branch
      %199 = sbr.rel (0) target = $region33
    $region32: #{tpu_custom_call.1} parent=1 // pred_region
      %201 = dma.done [#allocation4], 32
    $region33: #{tpu_custom_call.1} parent=1 // pred_fallthru
      _
    %202 = vsyncpa [#allocation3], 1
    %203 = vsyncpa [#allocation6], 1
    %204 = vsyncpa [#allocation4], 1

</llo_original>
